<compile_context>
chip_gen: v7x
topology: tpu7x:2x2x1
jax: 0.10.0
libtpu: 0.0.40
codegen_flags: <defaults>
</compile_context>

<pallas_src>
import jax
import jax.numpy as jnp
from jax.experimental import pallas as pl
from jax.experimental.pallas import tpu as pltpu


def embed_fused_kernel(ids_ref, fused_ref, out_ref):
    # ids_ref:   (Bt, S, 1) int32
    # fused_ref: (V, S, D)  float, fused[v, s, :] = tok_emb[v, :] + pos_emb[s, :]
    # out_ref:   (Bt, S, D)
    ids = ids_ref[...]
    V = fused_ref.shape[0]
    # Pure nested select chain over the tiny static vocab (no zeros + add passes).
    res = jnp.where(ids == (V - 1), fused_ref[V - 1], 0.0)          # (Bt, S, D)
    for v in range(V - 2, -1, -1):                                   # unrolled, V is tiny
        res = jnp.where(ids == v, fused_ref[v], res)
    out_ref[...] = res.astype(out_ref.dtype)


def embed_split_kernel(ids_ref, tok_ref, pos_ref, out_ref):
    # Fallback when V*S*D is too large to fuse: select token rows, then add pos.
    # ids_ref: (Bt, S, 1) int32, tok_ref: (V, D), pos_ref: (S, D), out_ref: (Bt, S, D)
    ids = ids_ref[...]
    V = tok_ref.shape[0]
    tok = jnp.where(ids == (V - 1), tok_ref[V - 1], 0.0)             # (Bt, S, D)
    for v in range(V - 2, -1, -1):
        tok = jnp.where(ids == v, tok_ref[v], tok)
    out_ref[...] = (tok + pos_ref[...]).astype(out_ref.dtype)


def _pick_batch_tile(B, S, D, itemsize, target_rows=2048, max_block_bytes=8 << 20):
    """Batch rows per grid step: ~target_rows of (D,) output per step, capped by bytes,
    and always >= 2 grid steps when B >= 2 so v7x megacore gets both TensorCores busy."""
    bt = max(1, target_rows // max(S, 1))
    bt = min(bt, max(1, max_block_bytes // max(S * D * itemsize, 1)))
    bt = min(bt, B)
    if B >= 2:
        bt = min(bt, -(-B // 2))          # ensures pl.cdiv(B, bt) >= 2
    return bt


def embedding_forward(x_ids, tok_emb, pos_emb, *, fused_table_max_bytes=2 << 20):
    """out[b, s, :] = tok_emb[x_ids[b, s], :] + pos_emb[s, :]."""
    B, S = x_ids.shape
    V, D = tok_emb.shape
    P = pos_emb.shape[0]
    assert S <= P, f"sequence length {S} exceeds position table size {P}"

    itemsize = tok_emb.dtype.itemsize
    # Positions are always arange(S): slice once in the wrapper.
    pos_slice = jax.lax.slice(pos_emb, (0, 0), (S, D))
    # Present ids as (B, S, 1) so the compare broadcasts along the lane (D) axis.
    x3 = x_ids.astype(jnp.int32)[:, :, None]

    Bt = _pick_batch_tile(B, S, D, itemsize)
    grid = (pl.cdiv(B, Bt),)              # ragged last block is masked on writeback

    ids_spec = pl.BlockSpec((Bt, S, 1), lambda b: (b, 0, 0))
    out_spec = pl.BlockSpec((Bt, S, D), lambda b: (b, 0, 0))

    fused_bytes = V * S * D * itemsize
    if fused_bytes <= fused_table_max_bytes:
        # Fused (tok + pos) table: one select chain in the kernel, no pos add pass.
        table = tok_emb[:, None, :] + pos_slice[None, :, :]          # (V, S, D)
        kernel = embed_fused_kernel
        table_specs = [pl.BlockSpec((V, S, D), lambda b: (0, 0, 0))]  # resident
        table_args = (table,)
        resident_bytes = 2 * fused_bytes
    else:
        kernel = embed_split_kernel
        table_specs = [pl.BlockSpec((V, D), lambda b: (0, 0)),        # resident
                       pl.BlockSpec((S, D), lambda b: (0, 0))]        # resident
        table_args = (tok_emb, pos_slice)
        resident_bytes = 2 * (V * D + S * D) * itemsize

    # Explicit VMEM budget: double-buffered out + ids blocks, resident tables, headroom.
    out_block_bytes = Bt * S * D * itemsize
    needed = 2 * out_block_bytes + 2 * Bt * S * 4 + resident_bytes
    vmem_limit = int(min(max(needed + (4 << 20), 32 << 20), 56 << 20))

    bytes_accessed = (B * S * D * itemsize            # output writes
                      + B * S * 4                     # ids reads
                      + sum(int(a.size) * itemsize for a in table_args))
    cost = pl.CostEstimate(flops=0, transcendentals=0,
                           bytes_accessed=int(bytes_accessed))

    return pl.pallas_call(
        kernel,
        out_shape=jax.ShapeDtypeStruct((B, S, D), tok_emb.dtype),
        grid=grid,
        in_specs=[ids_spec] + table_specs,
        out_specs=out_spec,
        compiler_params=pltpu.CompilerParams(
            dimension_semantics=("parallel",),
            vmem_limit_bytes=vmem_limit),
        cost_estimate=cost,
    )(x3, *table_args)


if __name__ == "__main__":
    # Module-consistent small shapes: vocab 'AGCUX-' -> V=6, embed_dim=768.
    VOCAB_SIZE = len("AGCUX-")        # 6
    EMBED_DIM = 768
    MAX_POS = 5000
    B, S = 2, 16

    key = jax.random.PRNGKey(0)
    k_tok, k_pos, k_ids = jax.random.split(key, 3)

    tok_emb = jax.random.normal(k_tok, (VOCAB_SIZE, EMBED_DIM), dtype=jnp.float32)
    pos_emb = jax.random.normal(k_pos, (MAX_POS, EMBED_DIM), dtype=jnp.float32)
    x_ids = jax.random.randint(k_ids, (B, S), 0, VOCAB_SIZE, dtype=jnp.int32)

    ref = tok_emb[x_ids] + pos_emb[jnp.arange(S)][None, :, :]

    # 1) Default (fused-table) path.
    out = jax.block_until_ready(embedding_forward(x_ids, tok_emb, pos_emb))
    assert out.shape == (B, S, EMBED_DIM)
    assert jnp.allclose(out, ref, atol=1e-5, rtol=1e-5), "fused path mismatch vs reference"

    # 2) Split (tok select + pos add) path, forced by disabling the fused table.
    out_split = jax.block_until_ready(
        embedding_forward(x_ids, tok_emb, pos_emb, fused_table_max_bytes=0))
    assert jnp.allclose(out_split, ref, atol=1e-5, rtol=1e-5), "split path mismatch vs reference"

    # 3) Non-divisor batch (ragged last block masked on writeback).
    x_ids3 = jax.random.randint(jax.random.PRNGKey(1), (3, S), 0, VOCAB_SIZE, dtype=jnp.int32)
    ref3 = tok_emb[x_ids3] + pos_emb[jnp.arange(S)][None, :, :]
    out3 = jax.block_until_ready(embedding_forward(x_ids3, tok_emb, pos_emb))
    assert jnp.allclose(out3, ref3, atol=1e-5, rtol=1e-5), "ragged-batch mismatch vs reference"

    # TODO(synk): mask_input uses host-side numpy RNG; it is data prep, not a
    # forward-pass hot path, so it is not implemented as a Pallas kernel.
    print("KERNEL_OK")
</pallas_src>

<mosaic_0001>
module attributes {stable_mosaic.version = 11 : i64} {
  func.func @embed_fused_kernel(%arg0: i32, %arg1: memref<1x16x1xi32, #tpu.memory_space<vmem>>, %arg2: memref<6x16x768xf32, #tpu.memory_space<vmem>>, %arg3: memref<1x16x768xf32, #tpu.memory_space<vmem>>) attributes {dimension_semantics = [#tpu.dimension_semantics<parallel>], iteration_bounds = array<i64: 2>, scalar_prefetch = 0 : i64, scratch_operands = 0 : i64, tpu.core_type = #tpu.core_type<tc>, window_params = [{transform_indices = @transform_0, window_bounds = array<i64: 1, 16, 1>}, {pipeline_mode = #tpu.pipeline_mode<synchronous>, transform_indices = @transform_1, window_bounds = array<i64: 6, 16, 768>}, {transform_indices = @transform_2, window_bounds = array<i64: 1, 16, 768>}]} {
    %c0 = arith.constant 0 : index
    %c0_0 = arith.constant 0 : index
    %c0_1 = arith.constant 0 : index
    %0 = vector.load %arg1[%c0, %c0_0, %c0_1] : memref<1x16x1xi32, #tpu.memory_space<vmem>>, vector<1x16x1xi32>
    %c5_i32 = arith.constant 5 : i32
    %1 = vector.broadcast %c5_i32 : i32 to vector<1x16x1xi32>
    %2 = arith.cmpi eq, %0, %1 : vector<1x16x1xi32>
    %c5 = arith.constant 5 : index
    %c0_2 = arith.constant 0 : index
    %c0_3 = arith.constant 0 : index
    %3 = vector.load %arg2[%c5, %c0_2, %c0_3] : memref<6x16x768xf32, #tpu.memory_space<vmem>>, vector<1x16x768xf32>
    %4 = vector.shape_cast %3 : vector<1x16x768xf32> to vector<16x768xf32>
    %cst = arith.constant 0.000000e+00 : f32
    %5 = vector.shape_cast %2 : vector<1x16x1xi1> to vector<1x16x1xi1>
    %6 = vector.broadcast %5 : vector<1x16x1xi1> to vector<1x16x768xi1>
    %7 = vector.shape_cast %4 : vector<16x768xf32> to vector<1x16x768xf32>
    %8 = vector.broadcast %cst : f32 to vector<1x16x768xf32>
    %9 = arith.select %6, %7, %8 : vector<1x16x768xi1>, vector<1x16x768xf32>
    %c4_i32 = arith.constant 4 : i32
    %10 = vector.broadcast %c4_i32 : i32 to vector<1x16x1xi32>
    %11 = arith.cmpi eq, %0, %10 : vector<1x16x1xi32>
    %c4 = arith.constant 4 : index
    %c0_4 = arith.constant 0 : index
    %c0_5 = arith.constant 0 : index
    %12 = vector.load %arg2[%c4, %c0_4, %c0_5] : memref<6x16x768xf32, #tpu.memory_space<vmem>>, vector<1x16x768xf32>
    %13 = vector.shape_cast %12 : vector<1x16x768xf32> to vector<16x768xf32>
    %14 = vector.shape_cast %11 : vector<1x16x1xi1> to vector<1x16x1xi1>
    %15 = vector.broadcast %14 : vector<1x16x1xi1> to vector<1x16x768xi1>
    %16 = vector.shape_cast %13 : vector<16x768xf32> to vector<1x16x768xf32>
    %17 = arith.select %15, %16, %9 : vector<1x16x768xi1>, vector<1x16x768xf32>
    %c3_i32 = arith.constant 3 : i32
    %18 = vector.broadcast %c3_i32 : i32 to vector<1x16x1xi32>
    %19 = arith.cmpi eq, %0, %18 : vector<1x16x1xi32>
    %c3 = arith.constant 3 : index
    %c0_6 = arith.constant 0 : index
    %c0_7 = arith.constant 0 : index
    %20 = vector.load %arg2[%c3, %c0_6, %c0_7] : memref<6x16x768xf32, #tpu.memory_space<vmem>>, vector<1x16x768xf32>
    %21 = vector.shape_cast %20 : vector<1x16x768xf32> to vector<16x768xf32>
    %22 = vector.shape_cast %19 : vector<1x16x1xi1> to vector<1x16x1xi1>
    %23 = vector.broadcast %22 : vector<1x16x1xi1> to vector<1x16x768xi1>
    %24 = vector.shape_cast %21 : vector<16x768xf32> to vector<1x16x768xf32>
    %25 = arith.select %23, %24, %17 : vector<1x16x768xi1>, vector<1x16x768xf32>
    %c2_i32 = arith.constant 2 : i32
    %26 = vector.broadcast %c2_i32 : i32 to vector<1x16x1xi32>
    %27 = arith.cmpi eq, %0, %26 : vector<1x16x1xi32>
    %c2 = arith.constant 2 : index
    %c0_8 = arith.constant 0 : index
    %c0_9 = arith.constant 0 : index
    %28 = vector.load %arg2[%c2, %c0_8, %c0_9] : memref<6x16x768xf32, #tpu.memory_space<vmem>>, vector<1x16x768xf32>
    %29 = vector.shape_cast %28 : vector<1x16x768xf32> to vector<16x768xf32>
    %30 = vector.shape_cast %27 : vector<1x16x1xi1> to vector<1x16x1xi1>
    %31 = vector.broadcast %30 : vector<1x16x1xi1> to vector<1x16x768xi1>
    %32 = vector.shape_cast %29 : vector<16x768xf32> to vector<1x16x768xf32>
    %33 = arith.select %31, %32, %25 : vector<1x16x768xi1>, vector<1x16x768xf32>
    %c1_i32 = arith.constant 1 : i32
    %34 = vector.broadcast %c1_i32 : i32 to vector<1x16x1xi32>
    %35 = arith.cmpi eq, %0, %34 : vector<1x16x1xi32>
    %c1 = arith.constant 1 : index
    %c0_10 = arith.constant 0 : index
    %c0_11 = arith.constant 0 : index
    %36 = vector.load %arg2[%c1, %c0_10, %c0_11] : memref<6x16x768xf32, #tpu.memory_space<vmem>>, vector<1x16x768xf32>
    %37 = vector.shape_cast %36 : vector<1x16x768xf32> to vector<16x768xf32>
    %38 = vector.shape_cast %35 : vector<1x16x1xi1> to vector<1x16x1xi1>
    %39 = vector.broadcast %38 : vector<1x16x1xi1> to vector<1x16x768xi1>
    %40 = vector.shape_cast %37 : vector<16x768xf32> to vector<1x16x768xf32>
    %41 = arith.select %39, %40, %33 : vector<1x16x768xi1>, vector<1x16x768xf32>
    %c0_i32 = arith.constant 0 : i32
    %42 = vector.broadcast %c0_i32 : i32 to vector<1x16x1xi32>
    %43 = arith.cmpi eq, %0, %42 : vector<1x16x1xi32>
    %c0_12 = arith.constant 0 : index
    %c0_13 = arith.constant 0 : index
    %c0_14 = arith.constant 0 : index
    %44 = vector.load %arg2[%c0_12, %c0_13, %c0_14] : memref<6x16x768xf32, #tpu.memory_space<vmem>>, vector<1x16x768xf32>
    %45 = vector.shape_cast %44 : vector<1x16x768xf32> to vector<16x768xf32>
    %46 = vector.shape_cast %43 : vector<1x16x1xi1> to vector<1x16x1xi1>
    %47 = vector.broadcast %46 : vector<1x16x1xi1> to vector<1x16x768xi1>
    %48 = vector.shape_cast %45 : vector<16x768xf32> to vector<1x16x768xf32>
    %49 = arith.select %47, %48, %41 : vector<1x16x768xi1>, vector<1x16x768xf32>
    %c0_15 = arith.constant 0 : index
    %c0_16 = arith.constant 0 : index
    %c0_17 = arith.constant 0 : index
    %50 = vector.load %arg3[%c0_15, %c0_16, %c0_17] : memref<1x16x768xf32, #tpu.memory_space<vmem>>, vector<1x16x768xf32>
    tpu.vector_store %arg3[%c0_15, %c0_16, %c0_17], %49 {strides = array<i32>} : memref<1x16x768xf32, #tpu.memory_space<vmem>>, vector<1x16x768xf32>,
    return
  }
  func.func @transform_0(%arg0: i32) -> (i32, i32, i32) {
    %c0_i32 = arith.constant 0 : i32
    %c0_i32_0 = arith.constant 0 : i32
    %c0_i32_1 = arith.constant 0 : i32
    return %arg0, %c0_i32, %c0_i32_0 : i32, i32, i32
  }
  func.func @transform_1(%arg0: i32) -> (i32, i32, i32) {
    %c0_i32 = arith.constant 0 : i32
    %c0_i32_0 = arith.constant 0 : i32
    %c0_i32_1 = arith.constant 0 : i32
    %c0_i32_2 = arith.constant 0 : i32
    return %c0_i32, %c0_i32_0, %c0_i32_1 : i32, i32, i32
  }
  func.func @transform_2(%arg0: i32) -> (i32, i32, i32) {
    %c0_i32 = arith.constant 0 : i32
    %c0_i32_0 = arith.constant 0 : i32
    %c0_i32_1 = arith.constant 0 : i32
    return %arg0, %c0_i32, %c0_i32_0 : i32, i32, i32
  }
}

</mosaic_0001>

<llo_original>
// kernel: tpu_custom_call.1
$region0: #{tpu_custom_call.1}
  #allocation0 [shape = 'u32[]', space=smem, size = 0x4, offset = 0x4, fixed_abs, tag = 'smem constant byte address 0x4 - core index']
  #allocation1 [shape = 'u32[144,128]{1,0:T(1,128)}', space=vmem, size = 0x12000, scoped, tag = 'internal scratch']
  %s0 = inlined_call_operand.vmem [shape: s32[2,16,1], index: 0, kind: input, shape index: {}]
  %s1 = inlined_call_operand.hbm [shape: f32[6,16,768], index: 1, kind: input, shape index: {}]
  %s2 = inlined_call_operand.hbm [shape: f32[2,16,768], index: 2, kind: output, shape index: {}]
  %s3 = sld [smem:[#allocation0]]
  $region45: #{tpu_custom_call.1} parent=0
    _
  %s5 = ssub.s32 1, %s3
  %s6 = scalar_select 0, %s5, %s3
  $region1: #{tpu_custom_call.1} parent=0
    #allocation2 [shape = 'u8[294912]{0}', space=vmem, size = 0x48000, scoped, tag = 'input window, operand 1, single buffered']
    #allocation3 [shape = 's32[2]{0}', space=sflag, size = 0x8, scoped, tag = 'scoped memory for tpu_custom_call.1']
    #allocation4 [shape = 's32[2]{0}', space=sflag, size = 0x8, scoped, tag = 'scoped memory for tpu_custom_call.1']
    #allocation5 [shape = 'u8[98304]{0}', space=vmem, size = 0x18000, scoped, tag = 'output window, operand 0']
    %7 = vsyncpa [#allocation3], 0
    %8 = vsyncpa [#allocation4], 0
    %s9 = scalar_lea.sflag [#allocation4], 1
    %10 = vsyncpa %s9, 0
    loop: start=0, step=1, limit=4
    $region2: #{tpu_custom_call.1} parent=1 // loop_pre_header
      _
    $region3: #{tpu_custom_call.1} parent=1 // loop_header
      %s12 = sphi 0, %s16
      %p13 = scmp.ge.s32.totalorder %s12, 4
      %s22 = sphi 0, %s24
      %s25 = sphi 0, %s22
      %s26 = sphi 0, %s25
      %s42 = sphi 0, %s26
      %s46 = sphi 0, %s46
      %s48 = sphi 0, %s46
      %s49 = sphi 0, %s48
      %s63 = sphi 0, %s49
      %s69 = sphi 0, %s71
      %s72 = sphi 0, %s69
      %s73 = sphi 0, %s72
      %s89 = sphi 0, %s73
    $region4: #{tpu_custom_call.1} parent=1 // loop_header_branch
      %15 = sbr.rel (%p13) target = $region8
    $region5: #{tpu_custom_call.1} parent=1 // loop_body
      %s17 = ssub.s32 %s12, 1
      %s18 = ssub.s32 %s12, 2
      %s19 = sadd.s32 %s12, 1
      %s20 = ssub.s32 %s12, %s19
      %p21 = scmp.eq.s32.totalorder %s20, 0
      %s23 = sadd.s32 %s22, 1
      %s24 = scalar_select %p21, %s22, %s23
      %p27 = pneg %p21
      %p28 = scmp.eq.s32.totalorder %s12, 1
      %p29 = por %p27, %p28
      %p30 = scmp.ne.s32.totalorder %s22, %s25
      %p31 = scmp.eq.s32.totalorder %s12, 0
      %p32 = por %p30, %p31
      %p33 = scmp.ne.s32.totalorder %s22, %s25
      %p34 = scmp.eq.s32.totalorder %s17, 1
      %p35 = por %p33, %p34
      %p36 = scmp.ne.s32.totalorder %s25, %s26
      %p37 = scmp.eq.s32.totalorder %s17, 0
      %p38 = por %p36, %p37
      %p39 = scmp.ne.s32.totalorder %s25, %s26
      %p40 = scmp.eq.s32.totalorder %s18, 1
      %p41 = por %p39, %p40
      %p43 = scmp.ne.s32.totalorder %s26, %s42
      %p44 = scmp.eq.s32.totalorder %s18, 0
      %p45 = por %p43, %p44
      %s47 = sadd.s32 %s46, 1
      %p50 = scmp.eq.s32.totalorder %s12, 1
      %p51 = scmp.ne.s32.totalorder %s46, %s48
      %p52 = scmp.eq.s32.totalorder %s12, 0
      %p53 = por %p51, %p52
      %p54 = scmp.ne.s32.totalorder %s46, %s48
      %p55 = scmp.eq.s32.totalorder %s17, 1
      %p56 = por %p54, %p55
      %p57 = scmp.ne.s32.totalorder %s48, %s49
      %p58 = scmp.eq.s32.totalorder %s17, 0
      %p59 = por %p57, %p58
      %p60 = scmp.ne.s32.totalorder %s48, %s49
      %p61 = scmp.eq.s32.totalorder %s18, 1
      %p62 = por %p60, %p61
      %p64 = scmp.ne.s32.totalorder %s49, %s63
      %p65 = scmp.eq.s32.totalorder %s18, 0
      %p66 = por %p64, %p65
      %s67 = ssub.s32 %s12, %s19
      %p68 = scmp.eq.s32.totalorder %s67, 0
      %s70 = sadd.s32 %s69, 1
      %s71 = scalar_select %p68, %s69, %s70
      %p74 = pneg %p68
      %p75 = scmp.eq.s32.totalorder %s12, 1
      %p76 = por %p74, %p75
      %p77 = scmp.ne.s32.totalorder %s69, %s72
      %p78 = scmp.eq.s32.totalorder %s12, 0
      %p79 = por %p77, %p78
      %p80 = scmp.ne.s32.totalorder %s69, %s72
      %p81 = scmp.eq.s32.totalorder %s17, 1
      %p82 = por %p80, %p81
      %p83 = scmp.ne.s32.totalorder %s72, %s73
      %p84 = scmp.eq.s32.totalorder %s17, 0
      %p85 = por %p83, %p84
      %p86 = scmp.ne.s32.totalorder %s72, %s73
      %p87 = scmp.eq.s32.totalorder %s18, 1
      %p88 = por %p86, %p87
      %p90 = scmp.ne.s32.totalorder %s73, %s89
      %p91 = scmp.eq.s32.totalorder %s18, 0
      %p92 = por %p90, %p91
      %p93 = scmp.le.s32.totalorder 1, %s12
      %p94 = scmp.lt.s32.totalorder %s12, 3
      %p95 = pnand %p93, %p94
      %p96 = pneg %p95
      // Predicated region
      $region9: #{tpu_custom_call.1} parent=5 // pred_check
        _
      $region10: #{tpu_custom_call.1} parent=5 // pred_check_branch
        %98 = sbr.rel (%p95) target = $region12
      $region11: #{tpu_custom_call.1} parent=5 // pred_region
        %s99 = ssub.s32 %s12, 1
        // Predicated region
        $region13: #{tpu_custom_call.1} parent=11 // pred_check
          %p100 = pneg %p59
        $region14: #{tpu_custom_call.1} parent=11 // pred_check_branch
          %102 = sbr.rel (%p100) target = $region16
        $region15: #{tpu_custom_call.1} parent=11 // pred_region
          %s104 = ssub.s32 9216, 9216
          %105 = vsyncadd [#allocation3], %s104
          %s106 = sshll.u32 [#allocation2], 4
          %s107 = int_to_ptr.vmem [resolvable:$true] %s106
          %112 = dma.hbm_to_vmem [thread:$0]  %s1, 9216, %s107, [#allocation3], 768, 768, 48
        $region16: #{tpu_custom_call.1} parent=11 // pred_fallthru
          _
      $region12: #{tpu_custom_call.1} parent=5 // pred_fallthru
        _
      %p113 = scmp.lt.s32.totalorder %s12, 2
      // Predicated region
      $region17: #{tpu_custom_call.1} parent=5 // pred_check
        %p114 = pneg %p113
      $region18: #{tpu_custom_call.1} parent=5 // pred_check_branch
        %116 = sbr.rel (%p114) target = $region20
      $region19: #{tpu_custom_call.1} parent=5 // pred_region
        // Predicated region
        $region21: #{tpu_custom_call.1} parent=19 // pred_check
          %p117 = pneg %p32
        $region22: #{tpu_custom_call.1} parent=19 // pred_check_branch
          %119 = sbr.rel (%p117) target = $region24
        $region23: #{tpu_custom_call.1} parent=19 // pred_region
          %p120 = scmp.lt.s32.totalorder %s12, 1
          %s121 = scalar_select %p120, %s12, 1
          %s122 = smul.addr %s121, 2
          %s123 = smul.addr %s122, 8
          %s124 = scalar_lea.vmem %s0, %s123
        $region24: #{tpu_custom_call.1} parent=19 // pred_fallthru
          _
      $region20: #{tpu_custom_call.1} parent=5 // pred_fallthru
        _
      %p125 = scmp.le.s32.totalorder 1, %s12
      %p126 = scmp.lt.s32.totalorder %s12, 3
      %p127 = pnand %p125, %p126
      %p128 = pneg %p127
      // Predicated region
      $region25: #{tpu_custom_call.1} parent=5 // pred_check
        _
      $region26: #{tpu_custom_call.1} parent=5 // pred_check_branch
        %130 = sbr.rel (%p127) target = $region28
      $region27: #{tpu_custom_call.1} parent=5 // pred_region
        %s131 = ssub.s32 %s12, 1
        // Predicated region
        $region29: #{tpu_custom_call.1} parent=27 // pred_check
          %p132 = pneg %p59
        $region30: #{tpu_custom_call.1} parent=27 // pred_check_branch
          %134 = sbr.rel (%p132) target = $region32
        $region31: #{tpu_custom_call.1} parent=27 // pred_region
          %135 = dma.done [#allocation3], 9216
        $region32: #{tpu_custom_call.1} parent=27 // pred_fallthru
          _
        %p136 = scmp.lt.s32.totalorder %s17, 1
        %s137 = scalar_select %p136, %s17, 1
        %s138 = smul.addr %s137, 2
        %s139 = smul.addr %s138, 8
        %s140 = scalar_lea.vmem %s0, %s139
        %p141 = pneg %p38
        %p142 = pneg %p35
        %p143 = pneg %p59
        %p144 = pneg %p56
        %p145 = pneg %p85
        %p146 = pneg %p82
        %s147 = sand.u32 %s72, 1
        %s148 = scalar_lea.sflag [#allocation4], %s147
        %s149 = sand.u32 %s72, 1
        %s150 = smul.addr %s149, 96
        %s151 = scalar_lea.vmem [#allocation5], %s150
        %p152 = scmp.lt.s32.totalorder %s17, 1
        %s153 = scalar_select %p152, %s17, 1
        %s154 = smul.addr %s153, 2
        %s155 = smul.addr %s154, 8
        %s156 = scalar_lea.vmem %s0, %s155
        %v157 = vld [vmem:[%s156] sm:$0xff]
        %v158 = vld [vmem:[%s156 + $0x8] sm:$0xff]
        %vm159 = vcmp.eq.s32.totalorder %v157, 5
        %vm160 = vcmp.eq.s32.totalorder %v158, 5
        %s161 = scalar_lea.vmem [#allocation2], 480
        %v162 = vld [vmem:[%s161] sm:$0xff]
        %v163 = vld [vmem:[%s161 + $0x8] sm:$0xff]
        %v164 = vld [vmem:[%s161 + $0x10] sm:$0xff]
        %v165 = vld [vmem:[%s161 + $0x18] sm:$0xff]
        %v166 = vld [vmem:[%s161 + $0x20] sm:$0xff]
        %v167 = vld [vmem:[%s161 + $0x28] sm:$0xff]
        %v168 = vld [vmem:[%s161 + $0x30] sm:$0xff]
        %v169 = vld [vmem:[%s161 + $0x38] sm:$0xff]
        %v170 = vld [vmem:[%s161 + $0x40] sm:$0xff]
        %v171 = vld [vmem:[%s161 + $0x48] sm:$0xff]
        %v172 = vld [vmem:[%s161 + $0x50] sm:$0xff]
        %v173 = vld [vmem:[%s161 + $0x58] sm:$0xff]
        %v174 = vsel %vm159, 1, 0
        %v175 = vsel %vm160, 1, 0
        %176 = vset.pattern.permute.xlu0 0
        %177 = vperm.xlu0 %176, %v174
        %v178 = vpop.permute.xlu0 %177
        %179 = vset.pattern.permute.xlu0 0
        %180 = vperm.xlu0 %179, %v175
        %v181 = vpop.permute.xlu0 %180
        %vm182 = vcmp.eq.s32.totalorder %v178, 1
        %vm183 = vcmp.eq.s32.totalorder %v181, 1
        %v184 = vsel %vm182, %v162, 0.0
        %v185 = vsel %vm182, %v163, 0.0
        %v186 = vsel %vm182, %v164, 0.0
        %v187 = vsel %vm182, %v165, 0.0
        %v188 = vsel %vm182, %v166, 0.0
        %v189 = vsel %vm182, %v167, 0.0
        %v190 = vsel %vm183, %v168, 0.0
        %v191 = vsel %vm183, %v169, 0.0
        %v192 = vsel %vm183, %v170, 0.0
        %v193 = vsel %vm183, %v171, 0.0
        %v194 = vsel %vm183, %v172, 0.0
        %v195 = vsel %vm183, %v173, 0.0
        %vm196 = vcmp.eq.s32.totalorder %v157, 4
        %vm197 = vcmp.eq.s32.totalorder %v158, 4
        %s198 = scalar_lea.vmem [#allocation2], 384
        %v199 = vld [vmem:[%s198] sm:$0xff]
        %v200 = vld [vmem:[%s198 + $0x8] sm:$0xff]
        %v201 = vld [vmem:[%s198 + $0x10] sm:$0xff]
        %v202 = vld [vmem:[%s198 + $0x18] sm:$0xff]
        %v203 = vld [vmem:[%s198 + $0x20] sm:$0xff]
        %v204 = vld [vmem:[%s198 + $0x28] sm:$0xff]
        %v205 = vld [vmem:[%s198 + $0x30] sm:$0xff]
        %v206 = vld [vmem:[%s198 + $0x38] sm:$0xff]
        %v207 = vld [vmem:[%s198 + $0x40] sm:$0xff]
        %v208 = vld [vmem:[%s198 + $0x48] sm:$0xff]
        %v209 = vld [vmem:[%s198 + $0x50] sm:$0xff]
        %v210 = vld [vmem:[%s198 + $0x58] sm:$0xff]
        %v211 = vsel %vm196, 1, 0
        %v212 = vsel %vm197, 1, 0
        %213 = vset.pattern.permute.xlu0 0
        %214 = vperm.xlu0 %213, %v211
        %v215 = vpop.permute.xlu0 %214
        %216 = vset.pattern.permute.xlu0 0
        %217 = vperm.xlu0 %216, %v212
        %v218 = vpop.permute.xlu0 %217
        %vm219 = vcmp.eq.s32.totalorder %v215, 1
        %vm220 = vcmp.eq.s32.totalorder %v218, 1
        %v221 = vsel %vm219, %v199, %v184
        %v222 = vsel %vm219, %v200, %v185
        %v223 = vsel %vm219, %v201, %v186
        %v224 = vsel %vm219, %v202, %v187
        %v225 = vsel %vm219, %v203, %v188
        %v226 = vsel %vm219, %v204, %v189
        %v227 = vsel %vm220, %v205, %v190
        %v228 = vsel %vm220, %v206, %v191
        %v229 = vsel %vm220, %v207, %v192
        %v230 = vsel %vm220, %v208, %v193
        %v231 = vsel %vm220, %v209, %v194
        %v232 = vsel %vm220, %v210, %v195
        %vm233 = vcmp.eq.s32.totalorder %v157, 3
        %vm234 = vcmp.eq.s32.totalorder %v158, 3
        %s235 = scalar_lea.vmem [#allocation2], 288
        %v236 = vld [vmem:[%s235] sm:$0xff]
        %v237 = vld [vmem:[%s235 + $0x8] sm:$0xff]
        %v238 = vld [vmem:[%s235 + $0x10] sm:$0xff]
        %v239 = vld [vmem:[%s235 + $0x18] sm:$0xff]
        %v240 = vld [vmem:[%s235 + $0x20] sm:$0xff]
        %v241 = vld [vmem:[%s235 + $0x28] sm:$0xff]
        %v242 = vld [vmem:[%s235 + $0x30] sm:$0xff]
        %v243 = vld [vmem:[%s235 + $0x38] sm:$0xff]
        %v244 = vld [vmem:[%s235 + $0x40] sm:$0xff]
        %v245 = vld [vmem:[%s235 + $0x48] sm:$0xff]
        %v246 = vld [vmem:[%s235 + $0x50] sm:$0xff]
        %v247 = vld [vmem:[%s235 + $0x58] sm:$0xff]
        %v248 = vsel %vm233, 1, 0
        %v249 = vsel %vm234, 1, 0
        %250 = vset.pattern.permute.xlu0 0
        %251 = vperm.xlu0 %250, %v248
        %v252 = vpop.permute.xlu0 %251
        %253 = vset.pattern.permute.xlu0 0
        %254 = vperm.xlu0 %253, %v249
        %v255 = vpop.permute.xlu0 %254
        %vm256 = vcmp.eq.s32.totalorder %v252, 1
        %vm257 = vcmp.eq.s32.totalorder %v255, 1
        %v258 = vsel %vm256, %v236, %v221
        %v259 = vsel %vm256, %v237, %v222
        %v260 = vsel %vm256, %v238, %v223
        %v261 = vsel %vm256, %v239, %v224
        %v262 = vsel %vm256, %v240, %v225
        %v263 = vsel %vm256, %v241, %v226
        %v264 = vsel %vm257, %v242, %v227
        %v265 = vsel %vm257, %v243, %v228
        %v266 = vsel %vm257, %v244, %v229
        %v267 = vsel %vm257, %v245, %v230
        %v268 = vsel %vm257, %v246, %v231
        %v269 = vsel %vm257, %v247, %v232
        %vm270 = vcmp.eq.s32.totalorder %v157, 2
        %vm271 = vcmp.eq.s32.totalorder %v158, 2
        %s272 = scalar_lea.vmem [#allocation2], 192
        %v273 = vld [vmem:[%s272] sm:$0xff]
        %v274 = vld [vmem:[%s272 + $0x8] sm:$0xff]
        %v275 = vld [vmem:[%s272 + $0x10] sm:$0xff]
        %v276 = vld [vmem:[%s272 + $0x18] sm:$0xff]
        %v277 = vld [vmem:[%s272 + $0x20] sm:$0xff]
        %v278 = vld [vmem:[%s272 + $0x28] sm:$0xff]
        %v279 = vld [vmem:[%s272 + $0x30] sm:$0xff]
        %v280 = vld [vmem:[%s272 + $0x38] sm:$0xff]
        %v281 = vld [vmem:[%s272 + $0x40] sm:$0xff]
        %v282 = vld [vmem:[%s272 + $0x48] sm:$0xff]
        %v283 = vld [vmem:[%s272 + $0x50] sm:$0xff]
        %v284 = vld [vmem:[%s272 + $0x58] sm:$0xff]
        %v285 = vsel %vm270, 1, 0
        %v286 = vsel %vm271, 1, 0
        %287 = vset.pattern.permute.xlu0 0
        %288 = vperm.xlu0 %287, %v285
        %v289 = vpop.permute.xlu0 %288
        %290 = vset.pattern.permute.xlu0 0
        %291 = vperm.xlu0 %290, %v286
        %v292 = vpop.permute.xlu0 %291
        %vm293 = vcmp.eq.s32.totalorder %v289, 1
        %vm294 = vcmp.eq.s32.totalorder %v292, 1
        %v295 = vsel %vm293, %v273, %v258
        %v296 = vsel %vm293, %v274, %v259
        %v297 = vsel %vm293, %v275, %v260
        %v298 = vsel %vm293, %v276, %v261
        %v299 = vsel %vm293, %v277, %v262
        %v300 = vsel %vm293, %v278, %v263
        %v301 = vsel %vm294, %v279, %v264
        %v302 = vsel %vm294, %v280, %v265
        %v303 = vsel %vm294, %v281, %v266
        %v304 = vsel %vm294, %v282, %v267
        %v305 = vsel %vm294, %v283, %v268
        %v306 = vsel %vm294, %v284, %v269
        %vm307 = vcmp.eq.s32.totalorder %v157, 1
        %vm308 = vcmp.eq.s32.totalorder %v158, 1
        %s309 = scalar_lea.vmem [#allocation2], 96
        %v310 = vld [vmem:[%s309] sm:$0xff]
        %v311 = vld [vmem:[%s309 + $0x8] sm:$0xff]
        %v312 = vld [vmem:[%s309 + $0x10] sm:$0xff]
        %v313 = vld [vmem:[%s309 + $0x18] sm:$0xff]
        %v314 = vld [vmem:[%s309 + $0x20] sm:$0xff]
        %v315 = vld [vmem:[%s309 + $0x28] sm:$0xff]
        %v316 = vld [vmem:[%s309 + $0x30] sm:$0xff]
        %v317 = vld [vmem:[%s309 + $0x38] sm:$0xff]
        %v318 = vld [vmem:[%s309 + $0x40] sm:$0xff]
        %v319 = vld [vmem:[%s309 + $0x48] sm:$0xff]
        %v320 = vld [vmem:[%s309 + $0x50] sm:$0xff]
        %v321 = vld [vmem:[%s309 + $0x58] sm:$0xff]
        %v322 = vsel %vm307, 1, 0
        %v323 = vsel %vm308, 1, 0
        %324 = vset.pattern.permute.xlu0 0
        %325 = vperm.xlu0 %324, %v322
        %v326 = vpop.permute.xlu0 %325
        %327 = vset.pattern.permute.xlu0 0
        %328 = vperm.xlu0 %327, %v323
        %v329 = vpop.permute.xlu0 %328
        %vm330 = vcmp.eq.s32.totalorder %v326, 1
        %vm331 = vcmp.eq.s32.totalorder %v329, 1
        %v332 = vsel %vm330, %v310, %v295
        %v333 = vsel %vm330, %v311, %v296
        %v334 = vsel %vm330, %v312, %v297
        %v335 = vsel %vm330, %v313, %v298
        %v336 = vsel %vm330, %v314, %v299
        %v337 = vsel %vm330, %v315, %v300
        %v338 = vsel %vm331, %v316, %v301
        %v339 = vsel %vm331, %v317, %v302
        %v340 = vsel %vm331, %v318, %v303
        %v341 = vsel %vm331, %v319, %v304
        %v342 = vsel %vm331, %v320, %v305
        %v343 = vsel %vm331, %v321, %v306
        %vm344 = vcmp.eq.s32.totalorder %v157, 0
        %vm345 = vcmp.eq.s32.totalorder %v158, 0
        %v346 = vld [vmem:[#allocation2] sm:$0xff]
        %v347 = vld [vmem:[#allocation2 + $0x8] sm:$0xff]
        %v348 = vld [vmem:[#allocation2 + $0x10] sm:$0xff]
        %v349 = vld [vmem:[#allocation2 + $0x18] sm:$0xff]
        %v350 = vld [vmem:[#allocation2 + $0x20] sm:$0xff]
        %v351 = vld [vmem:[#allocation2 + $0x28] sm:$0xff]
        %v352 = vld [vmem:[#allocation2 + $0x30] sm:$0xff]
        %v353 = vld [vmem:[#allocation2 + $0x38] sm:$0xff]
        %v354 = vld [vmem:[#allocation2 + $0x40] sm:$0xff]
        %v355 = vld [vmem:[#allocation2 + $0x48] sm:$0xff]
        %v356 = vld [vmem:[#allocation2 + $0x50] sm:$0xff]
        %v357 = vld [vmem:[#allocation2 + $0x58] sm:$0xff]
        %v358 = vsel %vm344, 1, 0
        %v359 = vsel %vm345, 1, 0
        %360 = vset.pattern.permute.xlu0 0
        %361 = vperm.xlu0 %360, %v358
        %v362 = vpop.permute.xlu0 %361
        %363 = vset.pattern.permute.xlu0 0
        %364 = vperm.xlu0 %363, %v359
        %v365 = vpop.permute.xlu0 %364
        %vm366 = vcmp.eq.s32.totalorder %v362, 1
        %vm367 = vcmp.eq.s32.totalorder %v365, 1
        %v368 = vsel %vm366, %v346, %v332
        %v369 = vsel %vm366, %v347, %v333
        %v370 = vsel %vm366, %v348, %v334
        %v371 = vsel %vm366, %v349, %v335
        %v372 = vsel %vm366, %v350, %v336
        %v373 = vsel %vm366, %v351, %v337
        %v374 = vsel %vm367, %v352, %v338
        %v375 = vsel %vm367, %v353, %v339
        %v376 = vsel %vm367, %v354, %v340
        %v377 = vsel %vm367, %v355, %v341
        %v378 = vsel %vm367, %v356, %v342
        %v379 = vsel %vm367, %v357, %v343
        %380 = vst [vmem:[%s151] sm:$0xff] %v368
        %381 = vst [vmem:[%s151 + $0x8] sm:$0xff] %v369
        %382 = vst [vmem:[%s151 + $0x10] sm:$0xff] %v370
        %383 = vst [vmem:[%s151 + $0x18] sm:$0xff] %v371
        %384 = vst [vmem:[%s151 + $0x20] sm:$0xff] %v372
        %385 = vst [vmem:[%s151 + $0x28] sm:$0xff] %v373
        %386 = vst [vmem:[%s151 + $0x30] sm:$0xff] %v374
        %387 = vst [vmem:[%s151 + $0x38] sm:$0xff] %v375
        %388 = vst [vmem:[%s151 + $0x40] sm:$0xff] %v376
        %389 = vst [vmem:[%s151 + $0x48] sm:$0xff] %v377
        %390 = vst [vmem:[%s151 + $0x50] sm:$0xff] %v378
        %391 = vst [vmem:[%s151 + $0x58] sm:$0xff] %v379
        %s392 = sand.u32 %s72, 1
        %s393 = scalar_lea.sflag [#allocation4], %s392
        %s394 = sand.u32 %s72, 1
        %s395 = smul.addr %s394, 96
        %s396 = scalar_lea.vmem [#allocation5], %s395
        // Predicated region
        $region33: #{tpu_custom_call.1} parent=27 // pred_check
          %p397 = pneg %p82
        $region34: #{tpu_custom_call.1} parent=27 // pred_check_branch
          %399 = sbr.rel (%p397) target = $region36
        $region35: #{tpu_custom_call.1} parent=27 // pred_region
          %s401 = ssub.s32 1536, 1536
          %402 = vsyncadd %s393, %s401
          %s403 = smul.addr %s17, 12
          %s404 = smul.addr %s403, 128
          %s405 = scalar_lea.hbm %s2, %s404
          %s406 = sshll.u32 %s396, 4
          %s407 = int_to_ptr.vmem [resolvable:$true] %s406
          %412 = dma.vmem_to_hbm [thread:$0]  %s407, 1536, %s405, %s393, 768, 768, 48
        $region36: #{tpu_custom_call.1} parent=27 // pred_fallthru
          _
      $region28: #{tpu_custom_call.1} parent=5 // pred_fallthru
        _
      %p413 = scmp.le.s32.totalorder 2, %s12
      // Predicated region
      $region37: #{tpu_custom_call.1} parent=5 // pred_check
        %p414 = pneg %p413
      $region38: #{tpu_custom_call.1} parent=5 // pred_check_branch
        %416 = sbr.rel (%p414) target = $region40
      $region39: #{tpu_custom_call.1} parent=5 // pred_region
        %s417 = ssub.s32 %s12, 2
        // Predicated region
        $region41: #{tpu_custom_call.1} parent=39 // pred_check
          %p418 = pneg %p88
        $region42: #{tpu_custom_call.1} parent=39 // pred_check_branch
          %420 = sbr.rel (%p418) target = $region44
        $region43: #{tpu_custom_call.1} parent=39 // pred_region
          %s421 = sand.u32 %s73, 1
          %s422 = scalar_lea.sflag [#allocation4], %s421
          %s423 = sand.u32 %s73, 1
          %s424 = smul.addr %s423, 96
          %s425 = scalar_lea.vmem [#allocation5], %s424
          %426 = dma.done %s422, 1536
        $region44: #{tpu_custom_call.1} parent=39 // pred_fallthru
          _
      $region40: #{tpu_custom_call.1} parent=5 // pred_fallthru
        _
    $region6: #{tpu_custom_call.1} parent=1 // loop_footer
      %s16 = sadd.s32 1, %s12
    $region7: #{tpu_custom_call.1} parent=1 // loop_footer_branch
      %11 = sbr.rel target = $region3
    $region8: #{tpu_custom_call.1} parent=1 // loop_exit
      _
    %427 = vsyncpa [#allocation3], 1
    %s428 = scalar_lea.sflag [#allocation3], 1
    %429 = vsyncpa %s428, 1
    %430 = vsyncpa [#allocation4], 1
    %s431 = scalar_lea.sflag [#allocation4], 1
    %432 = vsyncpa %s431, 1

</llo_original>
